<compile_context>
chip_gen: v7x
topology: tpu7x:2x2x1
jax: 0.10.0
libtpu: 0.0.40
codegen_flags: <defaults>
</compile_context>

<pallas_src>
import jax
import jax.numpy as jnp
from jax.experimental import pallas as pl
from jax.experimental.pallas import tpu as pltpu


def _make_stats_kernel(C, r_blk):
    """Kernel factory.

    Blocks: labels (1, r_blk, 128) int32, logits (1, C, r_blk, 128).
    Outputs: tp / sum_p accumulators of block shape (1, 1, C, 8, 128),
    resident across the innermost (reduction) grid axis.
    """

    def kernel(labels_ref, logits_ref, tp_ref, sp_ref):
        j = pl.program_id(2)

        @pl.when(j == 0)
        def _():
            tp_ref[...] = jnp.zeros_like(tp_ref)
            sp_ref[...] = jnp.zeros_like(sp_ref)

        logits = logits_ref[0].astype(jnp.float32)     # (C, r_blk, 128)
        labels = labels_ref[0]                         # (r_blk, 128) int32

        # Softmax over the class axis (leading dim): pure elementwise VPU work,
        # pixels fill both sublanes and lanes of every vreg.
        m = jnp.max(logits, axis=0, keepdims=True)     # (1, r_blk, 128)
        e = jnp.exp(logits - m)
        denom = jnp.sum(e, axis=0, keepdims=True)
        # Exact reciprocal keeps the result bit-close to the JAX reference.
        p = e * pl.reciprocal(denom, approx=False)     # (C, r_blk, 128)

        # One-hot(label) built in-register from a tiny (C, 1, 128) class iota
        # (no full (C, r_blk, 128) iota materialized per step).
        cls = jax.lax.broadcasted_iota(jnp.int32, (C, 1, 128), 0)
        onehot = labels[None, :, :] == cls             # (C, r_blk, 128) bool
        pt = jnp.where(onehot, p, 0.0)                 # p * one_hot(target)

        # Narrow per-step partials: collapse the pixel block to one (8, 128)
        # vreg per class with elementwise adds, so each step only reads/writes
        # C vregs of accumulator instead of C * r_blk / 8.
        def psum(x):                                   # (C, r_blk, 128) -> (C, 8, 128)
            return jnp.sum(x.reshape(C, r_blk // 8, 8, 128), axis=1)

        tp_ref[...] += psum(pt)[None, None]
        sp_ref[...] += psum(p)[None, None]

    return kernel


def _tversky_stats(logits, labels, *, target_block_bytes=4 * 1024 * 1024):
    """Per-class softmax statistics.

    logits: (N, C, HW) float; labels: (N, HW) int32 (any value outside [0, C),
    e.g. ignore_index, simply never matches a class).

    Returns float32 arrays of shape (C,):
      tp[c]    = sum over pixels of softmax(logits)[c] * (label == c)
      sum_p[c] = sum over pixels of softmax(logits)[c]
    """
    N, C, HW = logits.shape
    itemsize = jnp.dtype(logits.dtype).itemsize

    # --- C-aware block sizing -------------------------------------------------
    R = pl.cdiv(HW, 128)                               # rows of 128 pixels
    bytes_per_row = C * 128 * itemsize
    r_blk = max(8, (target_block_bytes // bytes_per_row) // 8 * 8)
    r_blk = int(min(r_blk, pl.cdiv(R, 8) * 8))         # never exceed (padded) data
    assert r_blk % 8 == 0

    num_blocks = pl.cdiv(R, r_blk)
    # Give a second v7x TensorCore independent work when N is odd / N == 1 by
    # splitting the pixel range (extra "parallel" axis). Harmless on 1-TC chips.
    split = 2 if (N % 2 == 1 and num_blocks >= 2) else 1
    num_j = pl.cdiv(num_blocks, split)
    R_pad = split * num_j * r_blk
    HW_pad = R_pad * 128
    pad = HW_pad - HW

    # --- padding (no in-kernel masking) ----------------------------------------
    # Padded pixels get zero logits (softmax == 1/C exactly) and label -1 (never
    # matches a class), so their only effect is an analytically known n_pad / C
    # added to each class's sum_p — subtracted after the kernel.
    if pad:
        logits = jnp.pad(logits, ((0, 0), (0, 0), (0, pad)))
        labels = jnp.pad(labels, ((0, 0), (0, pad)), constant_values=-1)
    logits4 = logits.reshape(N, C, R_pad, 128)
    labels3 = labels.reshape(N, R_pad, 128)

    kernel = _make_stats_kernel(C, r_blk)
    out_sh = jax.ShapeDtypeStruct((N, split, C, 8, 128), jnp.float32)
    acc_spec = pl.BlockSpec((1, 1, C, 8, 128), lambda n, s, j: (n, s, 0, 0, 0))

    tp_raw, sp_raw = pl.pallas_call(
        kernel,
        out_shape=(out_sh, out_sh),
        grid_spec=pltpu.PrefetchScalarGridSpec(
            num_scalar_prefetch=0,
            grid=(N, split, num_j),
            in_specs=[
                pl.BlockSpec((1, r_blk, 128),
                             lambda n, s, j: (n, s * num_j + j, 0)),     # labels
                pl.BlockSpec((1, C, r_blk, 128),
                             lambda n, s, j: (n, 0, s * num_j + j, 0)),  # logits
            ],
            out_specs=[acc_spec, acc_spec],
        ),
        compiler_params=pltpu.CompilerParams(
            dimension_semantics=("parallel", "parallel", "arbitrary"),
            # Above v5e's 16 MiB default scoped VMEM, below v7x's 64 MiB
            # physical. Live set: 2x logits block (double-buffered) + labels
            # block + tiny (C, 8, 128) accumulators.
            vmem_limit_bytes=48 * 1024 * 1024,
        ),
    )(labels3, logits4)

    tp = tp_raw.sum(axis=(0, 1, 3, 4))
    sum_p = sp_raw.sum(axis=(0, 1, 3, 4))
    if pad:
        sum_p = sum_p - (N * pad) / C                  # exact padding correction
    return tp, sum_p


def locally_weighted_tversky_focal_loss(predict, target, *, smooth=1.0,
                                        alpha=0.7, gamma=1.33,
                                        ignore_index=-100,
                                        target_block_bytes=4 * 1024 * 1024):
    """predict: [N, C, H, W] float logits; target: [N, H, W] int labels."""
    N, C, H, W = predict.shape
    HW = H * W
    P = N * HW

    logits = predict.reshape(N, C, HW)       # view-like reshape, native dtype
    labels = target.reshape(N, HW).astype(jnp.int32)

    # Per-class softmax statistics from the kernel.
    tp, sum_p = _tversky_stats(logits, labels,
                               target_block_bytes=target_block_bytes)

    # Per-class label counts (= sum of one-hot target) from the labels only
    # (1/C of the logits bytes); also reused for the local frequency weights.
    flat = labels.reshape(-1)
    counts = jnp.sum(
        (jnp.arange(C, dtype=jnp.int32)[:, None] == flat[None, :]).astype(jnp.float32),
        axis=1)

    fn = counts - tp          # sum((1 - p) * t)
    fp = sum_p - tp           # sum(p * (1 - t))

    # Local class weights: inverse label frequency over this batch, normalized
    # over classes present in the batch (excluding ignore_index); absent
    # classes get 1e-5, matching the reference module.
    cls = jnp.arange(C)
    not_ignored = cls != ignore_index
    present = (counts > 0) & not_ignored
    inv_ratio = jnp.where(present, jnp.float32(P) / jnp.maximum(counts, 1.0), 0.0)
    w = inv_ratio / jnp.maximum(jnp.sum(inv_ratio), jnp.float32(1e-12))
    loss_weight = jnp.where(present, w, jnp.float32(1e-5))

    # Binary Tversky focal loss per class, weighted sum over non-ignored classes.
    beta = 1.0 - alpha
    num = tp + smooth
    den = tp + alpha * fn + beta * fp + smooth
    base = jnp.maximum(1.0 - num / den, 0.0)   # guard fp rounding -> pow(neg) NaN
    per_class = jnp.power(base, 1.0 / gamma)
    return jnp.sum(jnp.where(not_ignored, per_class * loss_weight, 0.0))


def _reference_loss(predict, target, smooth=1.0, alpha=0.7, gamma=1.33,
                    ignore_index=-100):
    """Pure-JAX mirror of the PyTorch module, for a sanity check."""
    N, C = predict.shape[:2]
    numel = target.size
    counts = jnp.stack([jnp.sum(target == c) for c in range(C)]).astype(jnp.float32)
    cls = jnp.arange(C)
    present = (counts > 0) & (cls != ignore_index)
    inv = jnp.where(present, numel / jnp.maximum(counts, 1.0), 0.0)
    w = inv / jnp.sum(inv)
    loss_weight = jnp.where(present, w, jnp.float32(1e-5))

    p = jax.nn.softmax(predict.astype(jnp.float32), axis=1)
    onehot = jnp.transpose(jax.nn.one_hot(target, C, dtype=jnp.float32),
                           (0, 3, 1, 2))
    beta = 1.0 - alpha
    total = jnp.float32(0.0)
    for i in range(C):
        if i != ignore_index:
            pi = p[:, i].reshape(-1)
            ti = onehot[:, i].reshape(-1)
            tp = jnp.sum(pi * ti)
            num = tp + smooth
            den = (tp + alpha * jnp.sum((1.0 - pi) * ti)
                   + beta * jnp.sum(pi * (1.0 - ti)) + smooth)
            total = total + loss_weight[i] * jnp.power(1.0 - num / den, 1.0 / gamma)
    return total


if __name__ == "__main__":
    key = jax.random.PRNGKey(0)
    k1, k2 = jax.random.split(key)
    N, C, H, W = 2, 4, 16, 16
    predict = jax.random.normal(k1, (N, C, H, W), dtype=jnp.float32)
    target = jax.random.randint(k2, (N, H, W), 0, C, dtype=jnp.int32)

    loss = locally_weighted_tversky_focal_loss(predict, target)
    loss = jax.block_until_ready(loss)

    ref = jax.block_until_ready(_reference_loss(predict, target))
    assert jnp.allclose(loss, ref, rtol=5e-4, atol=1e-6), (loss, ref)

    print("KERNEL_OK")
</pallas_src>

<mosaic_0001>
module attributes {stable_mosaic.version = 11 : i64} {
  func.func @kernel(%arg0: i32, %arg1: i32, %arg2: i32, %arg3: memref<1x8x128xi32, #tpu.memory_space<vmem>>, %arg4: memref<1x4x8x128xf32, #tpu.memory_space<vmem>>, %arg5: memref<1x1x4x8x128xf32, #tpu.memory_space<vmem>>, %arg6: memref<1x1x4x8x128xf32, #tpu.memory_space<vmem>>) attributes {dimension_semantics = [#tpu.dimension_semantics<parallel>, #tpu.dimension_semantics<parallel>, #tpu.dimension_semantics<arbitrary>], iteration_bounds = array<i64: 2, 1, 1>, scalar_prefetch = 0 : i64, scratch_operands = 0 : i64, tpu.core_type = #tpu.core_type<tc>, window_params = [{transform_indices = @transform_0, window_bounds = array<i64: 1, 8, 128>}, {transform_indices = @transform_1, window_bounds = array<i64: 1, 4, 8, 128>}, {transform_indices = @transform_2, window_bounds = array<i64: 1, 1, 4, 8, 128>}, {transform_indices = @transform_3, window_bounds = array<i64: 1, 1, 4, 8, 128>}]} {
    %c0_i32 = arith.constant 0 : i32
    %0 = arith.cmpi eq, %arg2, %c0_i32 : i32
    %1 = arith.extui %0 : i1 to i32
    %c0_i32_0 = arith.constant 0 : i32
    %2 = arith.cmpi ne, %1, %c0_i32_0 : i32
    scf.if %2 {
      %cst_31 = arith.constant 0.000000e+00 : f32
      %36 = vector.broadcast %cst_31 : f32 to vector<1x1x4x8x128xf32>
      %c0_32 = arith.constant 0 : index
      %c0_33 = arith.constant 0 : index
      %c0_34 = arith.constant 0 : index
      %c0_35 = arith.constant 0 : index
      %c0_36 = arith.constant 0 : index
      %37 = vector.load %arg5[%c0_32, %c0_33, %c0_34, %c0_35, %c0_36] : memref<1x1x4x8x128xf32, #tpu.memory_space<vmem>>, vector<1x1x4x8x128xf32>
      tpu.vector_store %arg5[%c0_32, %c0_33, %c0_34, %c0_35, %c0_36], %36 {strides = array<i32>} : memref<1x1x4x8x128xf32, #tpu.memory_space<vmem>>, vector<1x1x4x8x128xf32>,
      %cst_37 = arith.constant 0.000000e+00 : f32
      %38 = vector.broadcast %cst_37 : f32 to vector<1x1x4x8x128xf32>
      %c0_38 = arith.constant 0 : index
      %c0_39 = arith.constant 0 : index
      %c0_40 = arith.constant 0 : index
      %c0_41 = arith.constant 0 : index
      %c0_42 = arith.constant 0 : index
      %39 = vector.load %arg6[%c0_38, %c0_39, %c0_40, %c0_41, %c0_42] : memref<1x1x4x8x128xf32, #tpu.memory_space<vmem>>, vector<1x1x4x8x128xf32>
      tpu.vector_store %arg6[%c0_38, %c0_39, %c0_40, %c0_41, %c0_42], %38 {strides = array<i32>} : memref<1x1x4x8x128xf32, #tpu.memory_space<vmem>>, vector<1x1x4x8x128xf32>,
    } else {
    }
    %c0 = arith.constant 0 : index
    %c0_1 = arith.constant 0 : index
    %c0_2 = arith.constant 0 : index
    %c0_3 = arith.constant 0 : index
    %3 = vector.load %arg4[%c0, %c0_1, %c0_2, %c0_3] : memref<1x4x8x128xf32, #tpu.memory_space<vmem>>, vector<1x4x8x128xf32>
    %4 = vector.shape_cast %3 : vector<1x4x8x128xf32> to vector<4x8x128xf32>
    %c0_4 = arith.constant 0 : index
    %c0_5 = arith.constant 0 : index
    %c0_6 = arith.constant 0 : index
    %5 = vector.load %arg3[%c0_4, %c0_5, %c0_6] : memref<1x8x128xi32, #tpu.memory_space<vmem>>, vector<1x8x128xi32>
    %6 = vector.shape_cast %5 : vector<1x8x128xi32> to vector<8x128xi32>
    %cst = arith.constant dense<0xFF800000> : vector<8x128xf32>
    %7 = vector.multi_reduction <maximumf>, %4, %cst [0] : vector<4x8x128xf32> to vector<8x128xf32>
    %8 = vector.shape_cast %7 : vector<8x128xf32> to vector<1x8x128xf32>
    %9 = vector.broadcast %8 : vector<1x8x128xf32> to vector<4x8x128xf32>
    %10 = arith.subf %4, %9 : vector<4x8x128xf32>
    %11 = math.exp %10 : vector<4x8x128xf32>
    %cst_7 = arith.constant dense<0.000000e+00> : vector<8x128xf32>
    %12 = vector.multi_reduction <add>, %11, %cst_7 [0] : vector<4x8x128xf32> to vector<8x128xf32>
    %13 = vector.shape_cast %12 : vector<8x128xf32> to vector<1x8x128xf32>
    %14 = tpu.reciprocal %13 : vector<1x8x128xf32> -> vector<1x8x128xf32>
    %15 = vector.broadcast %14 : vector<1x8x128xf32> to vector<4x8x128xf32>
    %16 = arith.mulf %11, %15 : vector<4x8x128xf32>
    %17 = tpu.iota {dimensions = array<i32: 0>} : vector<4x1x128xi32>
    %18 = vector.shape_cast %6 : vector<8x128xi32> to vector<1x8x128xi32>
    %19 = vector.broadcast %18 : vector<1x8x128xi32> to vector<4x8x128xi32>
    %20 = vector.broadcast %17 : vector<4x1x128xi32> to vector<4x8x128xi32>
    %21 = arith.cmpi eq, %19, %20 : vector<4x8x128xi32>
    %cst_8 = arith.constant 0.000000e+00 : f32
    %22 = vector.broadcast %cst_8 : f32 to vector<4x8x128xf32>
    %23 = arith.select %21, %16, %22 : vector<4x8x128xi1>, vector<4x8x128xf32>
    %c0_9 = arith.constant 0 : index
    %c0_10 = arith.constant 0 : index
    %c0_11 = arith.constant 0 : index
    %c0_12 = arith.constant 0 : index
    %c0_13 = arith.constant 0 : index
    %24 = vector.load %arg5[%c0_9, %c0_10, %c0_11, %c0_12, %c0_13] : memref<1x1x4x8x128xf32, #tpu.memory_space<vmem>>, vector<1x1x4x8x128xf32>
    %25 = vector.shape_cast %23 : vector<4x8x128xf32> to vector<4x1x8x128xf32>
    %cst_14 = arith.constant dense<0.000000e+00> : vector<4x8x128xf32>
    %26 = vector.multi_reduction <add>, %25, %cst_14 [1] : vector<4x1x8x128xf32> to vector<4x8x128xf32>
    %27 = vector.shape_cast %26 : vector<4x8x128xf32> to vector<1x1x4x8x128xf32>
    %28 = arith.addf %24, %27 : vector<1x1x4x8x128xf32>
    %c0_15 = arith.constant 0 : index
    %c0_16 = arith.constant 0 : index
    %c0_17 = arith.constant 0 : index
    %c0_18 = arith.constant 0 : index
    %c0_19 = arith.constant 0 : index
    %29 = vector.load %arg5[%c0_15, %c0_16, %c0_17, %c0_18, %c0_19] : memref<1x1x4x8x128xf32, #tpu.memory_space<vmem>>, vector<1x1x4x8x128xf32>
    tpu.vector_store %arg5[%c0_15, %c0_16, %c0_17, %c0_18, %c0_19], %28 {strides = array<i32>} : memref<1x1x4x8x128xf32, #tpu.memory_space<vmem>>, vector<1x1x4x8x128xf32>,
    %c0_20 = arith.constant 0 : index
    %c0_21 = arith.constant 0 : index
    %c0_22 = arith.constant 0 : index
    %c0_23 = arith.constant 0 : index
    %c0_24 = arith.constant 0 : index
    %30 = vector.load %arg6[%c0_20, %c0_21, %c0_22, %c0_23, %c0_24] : memref<1x1x4x8x128xf32, #tpu.memory_space<vmem>>, vector<1x1x4x8x128xf32>
    %31 = vector.shape_cast %16 : vector<4x8x128xf32> to vector<4x1x8x128xf32>
    %cst_25 = arith.constant dense<0.000000e+00> : vector<4x8x128xf32>
    %32 = vector.multi_reduction <add>, %31, %cst_25 [1] : vector<4x1x8x128xf32> to vector<4x8x128xf32>
    %33 = vector.shape_cast %32 : vector<4x8x128xf32> to vector<1x1x4x8x128xf32>
    %34 = arith.addf %30, %33 : vector<1x1x4x8x128xf32>
    %c0_26 = arith.constant 0 : index
    %c0_27 = arith.constant 0 : index
    %c0_28 = arith.constant 0 : index
    %c0_29 = arith.constant 0 : index
    %c0_30 = arith.constant 0 : index
    %35 = vector.load %arg6[%c0_26, %c0_27, %c0_28, %c0_29, %c0_30] : memref<1x1x4x8x128xf32, #tpu.memory_space<vmem>>, vector<1x1x4x8x128xf32>
    tpu.vector_store %arg6[%c0_26, %c0_27, %c0_28, %c0_29, %c0_30], %34 {strides = array<i32>} : memref<1x1x4x8x128xf32, #tpu.memory_space<vmem>>, vector<1x1x4x8x128xf32>,
    return
  }
  func.func @transform_0(%arg0: i32, %arg1: i32, %arg2: i32) -> (i32, i32, i32) {
    %c1_i32 = arith.constant 1 : i32
    %0 = arith.muli %arg1, %c1_i32 : i32
    %1 = arith.addi %0, %arg2 : i32
    %c0_i32 = arith.constant 0 : i32
    %c0_i32_0 = arith.constant 0 : i32
    return %arg0, %1, %c0_i32 : i32, i32, i32
  }
  func.func @transform_1(%arg0: i32, %arg1: i32, %arg2: i32) -> (i32, i32, i32, i32) {
    %c1_i32 = arith.constant 1 : i32
    %0 = arith.muli %arg1, %c1_i32 : i32
    %1 = arith.addi %0, %arg2 : i32
    %c0_i32 = arith.constant 0 : i32
    %c0_i32_0 = arith.constant 0 : i32
    %c0_i32_1 = arith.constant 0 : i32
    return %arg0, %c0_i32, %1, %c0_i32_0 : i32, i32, i32, i32
  }
  func.func @transform_2(%arg0: i32, %arg1: i32, %arg2: i32) -> (i32, i32, i32, i32, i32) {
    %c0_i32 = arith.constant 0 : i32
    %c0_i32_0 = arith.constant 0 : i32
    %c0_i32_1 = arith.constant 0 : i32
    %c0_i32_2 = arith.constant 0 : i32
    return %arg0, %arg1, %c0_i32, %c0_i32_0, %c0_i32_1 : i32, i32, i32, i32, i32
  }
  func.func @transform_3(%arg0: i32, %arg1: i32, %arg2: i32) -> (i32, i32, i32, i32, i32) {
    %c0_i32 = arith.constant 0 : i32
    %c0_i32_0 = arith.constant 0 : i32
    %c0_i32_1 = arith.constant 0 : i32
    %c0_i32_2 = arith.constant 0 : i32
    return %arg0, %arg1, %c0_i32, %c0_i32_0, %c0_i32_1 : i32, i32, i32, i32, i32
  }
}

</mosaic_0001>

<llo_original>
// kernel: tpu_custom_call.1
$region0: #{tpu_custom_call.1}
  #allocation0 [shape = 'u32[]', space=smem, size = 0x4, offset = 0x4, fixed_abs, tag = 'smem constant byte address 0x4 - core index']
  #allocation1 [shape = 'u32[144,128]{1,0:T(1,128)}', space=vmem, size = 0x12000, scoped, tag = 'internal scratch']
  %s0 = inlined_call_operand.hbm [shape: s32[2,8,128], index: 0, kind: input, shape index: {}]
  %s1 = inlined_call_operand.hbm [shape: f32[2,4,8,128], index: 1, kind: input, shape index: {}]
  %s2 = inlined_call_operand.hbm [shape: f32[2,1,4,8,128], index: 2, kind: output, shape index: {0}]
  %s3 = inlined_call_operand.hbm [shape: f32[2,1,4,8,128], index: 3, kind: output, shape index: {1}]
  %4 = xla_tuple %s2, %s3
  %s5 = sld [smem:[#allocation0]]
  $region61: #{tpu_custom_call.1} parent=0
    _
  %s7 = ssub.s32 1, %s5
  %s8 = scalar_select 0, %s7, %s5
  $region1: #{tpu_custom_call.1} parent=0
    #allocation2 [shape = 'u8[8192]{0}', space=vmem, size = 0x2000, scoped, tag = 'input window, operand 0']
    #allocation3 [shape = 's32[2]{0}', space=sflag, size = 0x8, scoped, tag = 'scoped memory for tpu_custom_call.1']
    #allocation4 [shape = 's32[2]{0}', space=sflag, size = 0x8, scoped, tag = 'scoped memory for tpu_custom_call.1']
    #allocation5 [shape = 'u8[32768]{0}', space=vmem, size = 0x8000, scoped, tag = 'input window, operand 1']
    #allocation6 [shape = 's32[2]{0}', space=sflag, size = 0x8, scoped, tag = 'scoped memory for tpu_custom_call.1']
    #allocation7 [shape = 'u8[32768]{0}', space=vmem, size = 0x8000, scoped, tag = 'output window, operand 0']
    #allocation8 [shape = 'u8[32768]{0}', space=vmem, size = 0x8000, scoped, tag = 'output window, operand 1']
    #allocation9 [shape = 's32[2]{0}', space=sflag, size = 0x8, scoped, tag = 'scoped memory for tpu_custom_call.1']
    %9 = vsyncpa [#allocation3], 0
    %s10 = scalar_lea.sflag [#allocation3], 1
    %11 = vsyncpa %s10, 0
    %12 = vsyncpa [#allocation6], 0
    %s13 = scalar_lea.sflag [#allocation6], 1
    %14 = vsyncpa %s13, 0
    %15 = vsyncpa [#allocation4], 0
    %s16 = scalar_lea.sflag [#allocation4], 1
    %17 = vsyncpa %s16, 0
    %18 = vsyncpa [#allocation9], 0
    %s19 = scalar_lea.sflag [#allocation9], 1
    %20 = vsyncpa %s19, 0
    loop: start=0, step=1, limit=4
    $region2: #{tpu_custom_call.1} parent=1 // loop_pre_header
      _
    $region3: #{tpu_custom_call.1} parent=1 // loop_header
      %s22 = sphi 0, %s26
      %p23 = scmp.ge.s32.totalorder %s22, 4
      %s29 = sphi 0, %s48
      %s30 = sphi 0, %s44
      %s31 = sphi 0, %s40
      %s32 = sphi 0, %s29
      %s33 = sphi 0, %s30
      %s34 = sphi 0, %s31
      %s35 = sphi 0, %s32
      %s36 = sphi 0, %s33
      %s37 = sphi 0, %s34
      %s55 = sphi 0, %s57
      %s58 = sphi 0, %s55
      %s59 = sphi 0, %s58
      %s75 = sphi 0, %s59
      %s85 = sphi 0, %s87
      %s88 = sphi 0, %s85
      %s89 = sphi 0, %s88
      %s105 = sphi 0, %s89
      %s113 = sphi 0, %s115
      %s116 = sphi 0, %s113
      %s117 = sphi 0, %s116
      %s133 = sphi 0, %s117
      %s141 = sphi 0, %s143
      %s144 = sphi 0, %s141
      %s145 = sphi 0, %s144
      %s161 = sphi 0, %s145
    $region4: #{tpu_custom_call.1} parent=1 // loop_header_branch
      %25 = sbr.rel (%p23) target = $region8
    $region5: #{tpu_custom_call.1} parent=1 // loop_body
      %s27 = ssub.s32 %s22, 1
      %s28 = ssub.s32 %s22, 2
      %s38 = sadd.s32 1, %s31
      %p39 = scmp.ge.s32.totalorder %s38, 1
      %s40 = scalar_select %p39, 0, %s38
      %s41 = sadd.s32 1, %s30
      %s42 = scalar_select %p39, %s41, %s30
      %p43 = scmp.ge.s32.totalorder %s42, 1
      %s44 = scalar_select %p43, 0, %s42
      %s45 = sadd.s32 1, %s29
      %s46 = scalar_select %p43, %s45, %s29
      %p47 = scmp.ge.s32.totalorder %s46, 2
      %s48 = scalar_select %p47, 0, %s46
      %s49 = sadd.s32 %s30, %s31
      %s50 = sadd.s32 %s44, %s40
      %s51 = ssub.s32 %s29, %s48
      %s52 = ssub.s32 %s49, %s50
      %s53 = sor.u32 %s51, %s52
      %p54 = scmp.eq.s32.totalorder %s53, 0
      %s56 = sadd.s32 %s55, 1
      %s57 = scalar_select %p54, %s55, %s56
      %p60 = pneg %p54
      %p61 = scmp.eq.s32.totalorder %s22, 1
      %p62 = por %p60, %p61
      %p63 = scmp.ne.s32.totalorder %s55, %s58
      %p64 = scmp.eq.s32.totalorder %s22, 0
      %p65 = por %p63, %p64
      %p66 = scmp.ne.s32.totalorder %s55, %s58
      %p67 = scmp.eq.s32.totalorder %s27, 1
      %p68 = por %p66, %p67
      %p69 = scmp.ne.s32.totalorder %s58, %s59
      %p70 = scmp.eq.s32.totalorder %s27, 0
      %p71 = por %p69, %p70
      %p72 = scmp.ne.s32.totalorder %s58, %s59
      %p73 = scmp.eq.s32.totalorder %s28, 1
      %p74 = por %p72, %p73
      %p76 = scmp.ne.s32.totalorder %s59, %s75
      %p77 = scmp.eq.s32.totalorder %s28, 0
      %p78 = por %p76, %p77
      %s79 = sadd.s32 %s30, %s31
      %s80 = sadd.s32 %s44, %s40
      %s81 = ssub.s32 %s29, %s48
      %s82 = ssub.s32 %s79, %s80
      %s83 = sor.u32 %s81, %s82
      %p84 = scmp.eq.s32.totalorder %s83, 0
      %s86 = sadd.s32 %s85, 1
      %s87 = scalar_select %p84, %s85, %s86
      %p90 = pneg %p84
      %p91 = scmp.eq.s32.totalorder %s22, 1
      %p92 = por %p90, %p91
      %p93 = scmp.ne.s32.totalorder %s85, %s88
      %p94 = scmp.eq.s32.totalorder %s22, 0
      %p95 = por %p93, %p94
      %p96 = scmp.ne.s32.totalorder %s85, %s88
      %p97 = scmp.eq.s32.totalorder %s27, 1
      %p98 = por %p96, %p97
      %p99 = scmp.ne.s32.totalorder %s88, %s89
      %p100 = scmp.eq.s32.totalorder %s27, 0
      %p101 = por %p99, %p100
      %p102 = scmp.ne.s32.totalorder %s88, %s89
      %p103 = scmp.eq.s32.totalorder %s28, 1
      %p104 = por %p102, %p103
      %p106 = scmp.ne.s32.totalorder %s89, %s105
      %p107 = scmp.eq.s32.totalorder %s28, 0
      %p108 = por %p106, %p107
      %s109 = ssub.s32 %s29, %s48
      %s110 = ssub.s32 %s30, %s44
      %s111 = sor.u32 %s109, %s110
      %p112 = scmp.eq.s32.totalorder %s111, 0
      %s114 = sadd.s32 %s113, 1
      %s115 = scalar_select %p112, %s113, %s114
      %p118 = pneg %p112
      %p119 = scmp.eq.s32.totalorder %s22, 1
      %p120 = por %p118, %p119
      %p121 = scmp.ne.s32.totalorder %s113, %s116
      %p122 = scmp.eq.s32.totalorder %s22, 0
      %p123 = por %p121, %p122
      %p124 = scmp.ne.s32.totalorder %s113, %s116
      %p125 = scmp.eq.s32.totalorder %s27, 1
      %p126 = por %p124, %p125
      %p127 = scmp.ne.s32.totalorder %s116, %s117
      %p128 = scmp.eq.s32.totalorder %s27, 0
      %p129 = por %p127, %p128
      %p130 = scmp.ne.s32.totalorder %s116, %s117
      %p131 = scmp.eq.s32.totalorder %s28, 1
      %p132 = por %p130, %p131
      %p134 = scmp.ne.s32.totalorder %s117, %s133
      %p135 = scmp.eq.s32.totalorder %s28, 0
      %p136 = por %p134, %p135
      %s137 = ssub.s32 %s29, %s48
      %s138 = ssub.s32 %s30, %s44
      %s139 = sor.u32 %s137, %s138
      %p140 = scmp.eq.s32.totalorder %s139, 0
      %s142 = sadd.s32 %s141, 1
      %s143 = scalar_select %p140, %s141, %s142
      %p146 = pneg %p140
      %p147 = scmp.eq.s32.totalorder %s22, 1
      %p148 = por %p146, %p147
      %p149 = scmp.ne.s32.totalorder %s141, %s144
      %p150 = scmp.eq.s32.totalorder %s22, 0
      %p151 = por %p149, %p150
      %p152 = scmp.ne.s32.totalorder %s141, %s144
      %p153 = scmp.eq.s32.totalorder %s27, 1
      %p154 = por %p152, %p153
      %p155 = scmp.ne.s32.totalorder %s144, %s145
      %p156 = scmp.eq.s32.totalorder %s27, 0
      %p157 = por %p155, %p156
      %p158 = scmp.ne.s32.totalorder %s144, %s145
      %p159 = scmp.eq.s32.totalorder %s28, 1
      %p160 = por %p158, %p159
      %p162 = scmp.ne.s32.totalorder %s145, %s161
      %p163 = scmp.eq.s32.totalorder %s28, 0
      %p164 = por %p162, %p163
      %p165 = scmp.le.s32.totalorder 1, %s22
      %p166 = scmp.lt.s32.totalorder %s22, 3
      %p167 = pnand %p165, %p166
      %p168 = pneg %p167
      // Predicated region
      $region9: #{tpu_custom_call.1} parent=5 // pred_check
        _
      $region10: #{tpu_custom_call.1} parent=5 // pred_check_branch
        %170 = sbr.rel (%p167) target = $region12
      $region11: #{tpu_custom_call.1} parent=5 // pred_region
        %s171 = ssub.s32 %s22, 1
      $region12: #{tpu_custom_call.1} parent=5 // pred_fallthru
        _
      %p172 = scmp.lt.s32.totalorder %s22, 2
      // Predicated region
      $region13: #{tpu_custom_call.1} parent=5 // pred_check
        %p173 = pneg %p172
      $region14: #{tpu_custom_call.1} parent=5 // pred_check_branch
        %175 = sbr.rel (%p173) target = $region16
      $region15: #{tpu_custom_call.1} parent=5 // pred_region
        // Predicated region
        $region17: #{tpu_custom_call.1} parent=15 // pred_check
          %p176 = pneg %p65
        $region18: #{tpu_custom_call.1} parent=15 // pred_check_branch
          %178 = sbr.rel (%p176) target = $region20
        $region19: #{tpu_custom_call.1} parent=15 // pred_region
          %s179 = sand.u32 %s55, 1
          %s180 = scalar_lea.sflag [#allocation3], %s179
          %s181 = sand.u32 %s55, 1
          %s182 = smul.addr %s181, 8
          %s183 = scalar_lea.vmem [#allocation2], %s182
          %s184 = sadd.s32 %s30, %s31
          %s186 = ssub.s32 128, 128
          %187 = vsyncadd %s180, %s186
          %s188 = sadd.s32 %s184, %s29
          %s189 = smul.addr %s188, 128
          %s190 = scalar_lea.hbm %s0, %s189
          %s192 = sshll.u32 %s183, 4
          %s193 = int_to_ptr.vmem [resolvable:$true] %s192
          %195 = dma.hbm_to_vmem [thread:$0]  %s190, 128, %s193, %s180
        $region20: #{tpu_custom_call.1} parent=15 // pred_fallthru
          _
        // Predicated region
        $region21: #{tpu_custom_call.1} parent=15 // pred_check
          %p196 = pneg %p95
        $region22: #{tpu_custom_call.1} parent=15 // pred_check_branch
          %198 = sbr.rel (%p196) target = $region24
        $region23: #{tpu_custom_call.1} parent=15 // pred_region
          %s199 = sand.u32 %s85, 1
          %s200 = scalar_lea.sflag [#allocation6], %s199
          %s201 = sand.u32 %s85, 1
          %s202 = smul.addr %s201, 32
          %s203 = scalar_lea.vmem [#allocation5], %s202
          %s204 = sadd.s32 %s30, %s31
          %s206 = ssub.s32 512, 512
          %207 = vsyncadd %s200, %s206
          %s208 = smul.addr %s29, 4
          %s209 = sadd.s32 %s204, %s208
          %s210 = smul.addr %s209, 128
          %s211 = scalar_lea.hbm %s1, %s210
          %s212 = sshll.u32 %s203, 4
          %s213 = int_to_ptr.vmem [resolvable:$true] %s212
          %218 = dma.hbm_to_vmem [thread:$0]  %s211, 512, %s213, %s200, 128, 128, 8
        $region24: #{tpu_custom_call.1} parent=15 // pred_fallthru
          _
      $region16: #{tpu_custom_call.1} parent=5 // pred_fallthru
        _
      %p219 = scmp.le.s32.totalorder 1, %s22
      %p220 = scmp.lt.s32.totalorder %s22, 3
      %p221 = pnand %p219, %p220
      %p222 = pneg %p221
      // Predicated region
      $region25: #{tpu_custom_call.1} parent=5 // pred_check
        _
      $region26: #{tpu_custom_call.1} parent=5 // pred_check_branch
        %224 = sbr.rel (%p221) target = $region28
      $region27: #{tpu_custom_call.1} parent=5 // pred_region
        %s225 = ssub.s32 %s22, 1
        %s226 = sand.u32 %s58, 1
        %s227 = scalar_lea.sflag [#allocation3], %s226
        %s228 = sand.u32 %s58, 1
        %s229 = smul.addr %s228, 8
        %s230 = scalar_lea.vmem [#allocation2], %s229
        // Predicated region
        $region29: #{tpu_custom_call.1} parent=27 // pred_check
          %p231 = pneg %p71
        $region30: #{tpu_custom_call.1} parent=27 // pred_check_branch
          %233 = sbr.rel (%p231) target = $region32
        $region31: #{tpu_custom_call.1} parent=27 // pred_region
          %234 = dma.done %s227, 128
        $region32: #{tpu_custom_call.1} parent=27 // pred_fallthru
          _
        %s235 = sand.u32 %s88, 1
        %s236 = scalar_lea.sflag [#allocation6], %s235
        %s237 = sand.u32 %s88, 1
        %s238 = smul.addr %s237, 32
        %s239 = scalar_lea.vmem [#allocation5], %s238
        // Predicated region
        $region33: #{tpu_custom_call.1} parent=27 // pred_check
          %p240 = pneg %p101
        $region34: #{tpu_custom_call.1} parent=27 // pred_check_branch
          %242 = sbr.rel (%p240) target = $region36
        $region35: #{tpu_custom_call.1} parent=27 // pred_region
          %243 = dma.done %s236, 512
        $region36: #{tpu_custom_call.1} parent=27 // pred_fallthru
          _
        %s244 = sand.u32 %s58, 1
        %s245 = scalar_lea.sflag [#allocation3], %s244
        %s246 = sand.u32 %s58, 1
        %s247 = smul.addr %s246, 8
        %s248 = scalar_lea.vmem [#allocation2], %s247
        %p249 = pneg %p71
        %p250 = pneg %p68
        %s251 = sand.u32 %s88, 1
        %s252 = scalar_lea.sflag [#allocation6], %s251
        %s253 = sand.u32 %s88, 1
        %s254 = smul.addr %s253, 32
        %s255 = scalar_lea.vmem [#allocation5], %s254
        %p256 = pneg %p101
        %p257 = pneg %p98
        %p258 = pneg %p129
        %p259 = pneg %p126
        %s260 = sand.u32 %s116, 1
        %s261 = scalar_lea.sflag [#allocation4], %s260
        %s262 = sand.u32 %s116, 1
        %s263 = smul.addr %s262, 32
        %s264 = scalar_lea.vmem [#allocation7], %s263
        %p265 = pneg %p157
        %p266 = pneg %p154
        %s267 = sand.u32 %s144, 1
        %s268 = scalar_lea.sflag [#allocation9], %s267
        %s269 = sand.u32 %s144, 1
        %s270 = smul.addr %s269, 32
        %s271 = scalar_lea.vmem [#allocation8], %s270
        %s272 = sadd.s32 %s33, %s34
        %s273 = sadd.s32 %s33, %s34
        %p274 = scmp.eq.s32.totalorder %s34, 0
        // Predicated region
        $region37: #{tpu_custom_call.1} parent=27 // pred_check
          %p275 = pneg %p274
        $region38: #{tpu_custom_call.1} parent=27 // pred_check_branch
          %277 = sbr.rel (%p275) target = $region40
        $region39: #{tpu_custom_call.1} parent=27 // pred_region
          %278 = vst [vmem:[%s264] sm:$0xff] 0.0
          %279 = vst [vmem:[%s264 + $0x8] sm:$0xff] 0.0
          %280 = vst [vmem:[%s264 + $0x10] sm:$0xff] 0.0
          %281 = vst [vmem:[%s264 + $0x18] sm:$0xff] 0.0
          %282 = vst [vmem:[%s271] sm:$0xff] 0.0
          %283 = vst [vmem:[%s271 + $0x8] sm:$0xff] 0.0
          %284 = vst [vmem:[%s271 + $0x10] sm:$0xff] 0.0
          %285 = vst [vmem:[%s271 + $0x18] sm:$0xff] 0.0
        $region40: #{tpu_custom_call.1} parent=27 // pred_fallthru
          _
        %v286 = vld [vmem:[%s239] sm:$0xff]
        %v287 = vld [vmem:[%s239 + $0x8] sm:$0xff]
        %v288 = vld [vmem:[%s239 + $0x10] sm:$0xff]
        %v289 = vld [vmem:[%s239 + $0x18] sm:$0xff]
        %v290 = vld [vmem:[%s230] sm:$0xff]
        %v291 = vmax.f32 %v286, %v287
        %v292 = vmax.f32 %v288, %v289
        %v293 = vmax.f32 %v291, %v292
        %v294 = vsub.f32 %v286, %v293
        %v295 = vsub.f32 %v287, %v293
        %v296 = vsub.f32 %v288, %v293
        %v297 = vsub.f32 %v289, %v293
        %v298 = vmul.f32 %v294, 1.442695
        %v299 = vpow.pop %v298
        %v300 = vmul.f32 %v295, 1.442695
        %v301 = vpow.pop %v300
        %v302 = vmul.f32 %v296, 1.442695
        %v303 = vpow.pop %v302
        %v304 = vmul.f32 %v297, 1.442695
        %v305 = vpow.pop %v304
        %v306 = vadd.f32 %v299, %v301
        %v307 = vadd.f32 %v306, %v303
        %v308 = vadd.f32 %v307, %v305
        %v309 = vrcp.pop %v308
        %v310 = vmul.f32 %v299, %v309
        %v311 = vmul.f32 %v301, %v309
        %v312 = vmul.f32 %v303, %v309
        %v313 = vmul.f32 %v305, %v309
        %vm314 = vcmp.eq.s32.totalorder %v290, 0
        %vm315 = vcmp.eq.s32.totalorder %v290, 1
        %vm316 = vcmp.eq.s32.totalorder %v290, 2
        %vm317 = vcmp.eq.s32.totalorder %v290, 3
        %v318 = vsel %vm314, %v310, 0.0
        %v319 = vsel %vm315, %v311, 0.0
        %v320 = vsel %vm316, %v312, 0.0
        %v321 = vsel %vm317, %v313, 0.0
        %v322 = vld [vmem:[%s264] sm:$0xff]
        %v323 = vld [vmem:[%s264 + $0x8] sm:$0xff]
        %v324 = vld [vmem:[%s264 + $0x10] sm:$0xff]
        %v325 = vld [vmem:[%s264 + $0x18] sm:$0xff]
        %v326 = vadd.f32 %v318, 0.0
        %v327 = vadd.f32 %v319, 0.0
        %v328 = vadd.f32 %v320, 0.0
        %v329 = vadd.f32 %v321, 0.0
        %v330 = vadd.f32 %v322, %v326
        %v331 = vadd.f32 %v323, %v327
        %v332 = vadd.f32 %v324, %v328
        %v333 = vadd.f32 %v325, %v329
        %334 = vst [vmem:[%s264] sm:$0xff] %v330
        %335 = vst [vmem:[%s264 + $0x8] sm:$0xff] %v331
        %336 = vst [vmem:[%s264 + $0x10] sm:$0xff] %v332
        %337 = vst [vmem:[%s264 + $0x18] sm:$0xff] %v333
        %v338 = vld [vmem:[%s271] sm:$0xff]
        %v339 = vld [vmem:[%s271 + $0x8] sm:$0xff]
        %v340 = vld [vmem:[%s271 + $0x10] sm:$0xff]
        %v341 = vld [vmem:[%s271 + $0x18] sm:$0xff]
        %v342 = vadd.f32 %v310, 0.0
        %v343 = vadd.f32 %v311, 0.0
        %v344 = vadd.f32 %v312, 0.0
        %v345 = vadd.f32 %v313, 0.0
        %v346 = vadd.f32 %v338, %v342
        %v347 = vadd.f32 %v339, %v343
        %v348 = vadd.f32 %v340, %v344
        %v349 = vadd.f32 %v341, %v345
        %350 = vst [vmem:[%s271] sm:$0xff] %v346
        %351 = vst [vmem:[%s271 + $0x8] sm:$0xff] %v347
        %352 = vst [vmem:[%s271 + $0x10] sm:$0xff] %v348
        %353 = vst [vmem:[%s271 + $0x18] sm:$0xff] %v349
        %s354 = sand.u32 %s116, 1
        %s355 = scalar_lea.sflag [#allocation4], %s354
        %s356 = sand.u32 %s116, 1
        %s357 = smul.addr %s356, 32
        %s358 = scalar_lea.vmem [#allocation7], %s357
        %s359 = sand.u32 %s144, 1
        %s360 = scalar_lea.sflag [#allocation9], %s359
        %s361 = sand.u32 %s144, 1
        %s362 = smul.addr %s361, 32
        %s363 = scalar_lea.vmem [#allocation8], %s362
        // Predicated region
        $region41: #{tpu_custom_call.1} parent=27 // pred_check
          %p364 = pneg %p126
        $region42: #{tpu_custom_call.1} parent=27 // pred_check_branch
          %366 = sbr.rel (%p364) target = $region44
        $region43: #{tpu_custom_call.1} parent=27 // pred_region
          %s368 = ssub.s32 512, 512
          %369 = vsyncadd %s355, %s368
          %s370 = smul.addr %s33, 4
          %s371 = smul.addr %s32, 4
          %s372 = sadd.s32 %s370, %s371
          %s373 = smul.addr %s372, 128
          %s374 = scalar_lea.hbm %s2, %s373
          %s375 = sshll.u32 %s358, 4
          %s376 = int_to_ptr.vmem [resolvable:$true] %s375
          %381 = dma.vmem_to_hbm [thread:$0]  %s376, 512, %s374, %s355, 128, 128, 8
        $region44: #{tpu_custom_call.1} parent=27 // pred_fallthru
          _
        // Predicated region
        $region45: #{tpu_custom_call.1} parent=27 // pred_check
          %p382 = pneg %p154
        $region46: #{tpu_custom_call.1} parent=27 // pred_check_branch
          %384 = sbr.rel (%p382) target = $region48
        $region47: #{tpu_custom_call.1} parent=27 // pred_region
          %s386 = ssub.s32 512, 512
          %387 = vsyncadd %s360, %s386
          %s388 = smul.addr %s33, 4
          %s389 = smul.addr %s32, 4
          %s390 = sadd.s32 %s388, %s389
          %s391 = smul.addr %s390, 128
          %s392 = scalar_lea.hbm %s3, %s391
          %s393 = sshll.u32 %s363, 4
          %s394 = int_to_ptr.vmem [resolvable:$true] %s393
          %399 = dma.vmem_to_hbm [thread:$0]  %s394, 512, %s392, %s360, 128, 128, 8
        $region48: #{tpu_custom_call.1} parent=27 // pred_fallthru
          _
      $region28: #{tpu_custom_call.1} parent=5 // pred_fallthru
        _
      %p400 = scmp.le.s32.totalorder 2, %s22
      // Predicated region
      $region49: #{tpu_custom_call.1} parent=5 // pred_check
        %p401 = pneg %p400
      $region50: #{tpu_custom_call.1} parent=5 // pred_check_branch
        %403 = sbr.rel (%p401) target = $region52
      $region51: #{tpu_custom_call.1} parent=5 // pred_region
        %s404 = ssub.s32 %s22, 2
        // Predicated region
        $region53: #{tpu_custom_call.1} parent=51 // pred_check
          %p405 = pneg %p132
        $region54: #{tpu_custom_call.1} parent=51 // pred_check_branch
          %407 = sbr.rel (%p405) target = $region56
        $region55: #{tpu_custom_call.1} parent=51 // pred_region
          %s408 = sand.u32 %s117, 1
          %s409 = scalar_lea.sflag [#allocation4], %s408
          %s410 = sand.u32 %s117, 1
          %s411 = smul.addr %s410, 32
          %s412 = scalar_lea.vmem [#allocation7], %s411
          %413 = dma.done %s409, 512
        $region56: #{tpu_custom_call.1} parent=51 // pred_fallthru
          _
        // Predicated region
        $region57: #{tpu_custom_call.1} parent=51 // pred_check
          %p414 = pneg %p160
        $region58: #{tpu_custom_call.1} parent=51 // pred_check_branch
          %416 = sbr.rel (%p414) target = $region60
        $region59: #{tpu_custom_call.1} parent=51 // pred_region
          %s417 = sand.u32 %s145, 1
          %s418 = scalar_lea.sflag [#allocation9], %s417
          %s419 = sand.u32 %s145, 1
          %s420 = smul.addr %s419, 32
          %s421 = scalar_lea.vmem [#allocation8], %s420
          %422 = dma.done %s418, 512
        $region60: #{tpu_custom_call.1} parent=51 // pred_fallthru
          _
      $region52: #{tpu_custom_call.1} parent=5 // pred_fallthru
        _
    $region6: #{tpu_custom_call.1} parent=1 // loop_footer
      %s26 = sadd.s32 1, %s22
    $region7: #{tpu_custom_call.1} parent=1 // loop_footer_branch
      %21 = sbr.rel target = $region3
    $region8: #{tpu_custom_call.1} parent=1 // loop_exit
      _
    %423 = vsyncpa [#allocation3], 1
    %s424 = scalar_lea.sflag [#allocation3], 1
    %425 = vsyncpa %s424, 1
    %426 = vsyncpa [#allocation6], 1
    %s427 = scalar_lea.sflag [#allocation6], 1
    %428 = vsyncpa %s427, 1
    %429 = vsyncpa [#allocation4], 1
    %s430 = scalar_lea.sflag [#allocation4], 1
    %431 = vsyncpa %s430, 1
    %432 = vsyncpa [#allocation9], 1
    %s433 = scalar_lea.sflag [#allocation9], 1
    %434 = vsyncpa %s433, 1

</llo_original>
